<compile_context>
chip_gen: v5e
topology: v5e:2x2
jax: 0.10.0
libtpu: 0.0.40
codegen_flags: <defaults>
</compile_context>

<pallas_src>
import functools
import math

import jax
import jax.numpy as jnp
from jax import lax
from jax.experimental import pallas as pl
from jax.experimental.pallas import tpu as pltpu

_VMEM_LIMIT_BYTES = 32 * 1024 * 1024   # safe scoped limit on v5e / v6e / v7x


# ---------------------------------------------------------------------------
# Elementwise focal-loss math (runs on VMEM tiles inside the kernels).
# ---------------------------------------------------------------------------
def _pow_gamma(p, gamma):
    g = float(gamma)
    if g == 0.0:
        return jnp.ones_like(p)
    if g == 1.0:
        return p
    if g == 2.0:
        return p * p
    if g == 3.0:
        return p * p * p
    if g == 4.0:
        p2 = p * p
        return p2 * p2
    return jnp.power(p, g)


def _focal_elementwise(x, t, *, alpha, gamma, smooth):
    """Per-element focal loss.  2 heavy EUP ops (exp, log1p) + 1 reciprocal."""
    x = x.astype(jnp.float32)
    t = t.astype(jnp.float32)
    e = jnp.exp(-jnp.abs(x))                    # in (0, 1], always finite
    lp1 = jnp.log1p(e)
    ls = jnp.minimum(x, 0.0) - lp1              # log_sigmoid(x), stable
    log_sig_neg = ls - x                        # log_sigmoid(-x), exact identity
    r = pl.reciprocal(1.0 + e)                  # full-precision reciprocal
    prob = jnp.where(x >= 0.0, r, 1.0 - r)      # sigmoid(x)
    prob = jnp.clip(prob, smooth, 1.0 - smooth)
    # log(clip(sigmoid(x), smooth, 1-smooth)) == clip(log_sigmoid(x), ...)
    log_prob = jnp.clip(ls, math.log(smooth), math.log1p(-smooth))
    # Exact ==1 / ==0 semantics (non-binary targets give zero loss).
    pos_w = jnp.where(t == 1.0, _pow_gamma(1.0 - prob, gamma), 0.0)
    neg_w = jnp.where(t == 0.0, _pow_gamma(prob, gamma), 0.0)
    return (-alpha) * pos_w * log_prob + (alpha - 1.0) * neg_w * log_sig_neg


# ---------------------------------------------------------------------------
# Kernel 1: unreduced loss ('none').  Pure elementwise map over row tiles.
# Partial last block: out-of-range rows compute garbage but the writeback is
# clipped to the array, so no masking is needed.
# ---------------------------------------------------------------------------
def _focal_none_kernel(out_ref, tgt_ref, loss_ref, *, alpha, gamma, smooth):
    loss = _focal_elementwise(out_ref[...], tgt_ref[...],
                              alpha=alpha, gamma=gamma, smooth=smooth)
    loss_ref[...] = loss.astype(loss_ref.dtype)


# ---------------------------------------------------------------------------
# Kernel 2: reduced loss ('mean'/'sum').  Grid = (splits, tiles-per-split).
# Chunked accumulation into an (8, C) f32 VMEM accumulator; rows beyond N
# (ragged tail and the clamped duplicate tile) are masked to zero; the single
# cross-lane reduce + scale runs once per split on the last step.
# ---------------------------------------------------------------------------
def _focal_reduce_kernel(out_ref, tgt_ref, sum_ref, acc_ref, *,
                         alpha, gamma, smooth, scale,
                         n_rows, tn, chunk, tiles_per_split):
    s = pl.program_id(0)
    i = pl.program_id(1)

    @pl.when(i == 0)
    def _():
        acc_ref[...] = jnp.zeros_like(acc_ref)

    c = out_ref.shape[1]
    num_chunks = tn // chunk
    # Logical (unclamped) tile index.  For the duplicate tile introduced by
    # the clamped index_map this is >= total tiles -> every row masked below.
    tile_start = (s * tiles_per_split + i) * tn
    row_iota = lax.broadcasted_iota(jnp.int32, (chunk, 1), 0)

    def chunk_body(off):
        loss = _focal_elementwise(out_ref[pl.ds(off, chunk), :],
                                  tgt_ref[pl.ds(off, chunk), :],
                                  alpha=alpha, gamma=gamma, smooth=smooth)
        rid = tile_start + off + row_iota
        loss = jnp.where(rid < n_rows, loss, 0.0)
        # Fold rows in groups of 8 sublanes -> pure VPU adds into the acc.
        acc_ref[...] += jnp.sum(loss.reshape(chunk // 8, 8, c), axis=0)

    if num_chunks == 1:
        chunk_body(0)
    else:
        def body(ci, carry):
            chunk_body(pl.multiple_of(ci * chunk, chunk))
            return carry
        lax.fori_loop(0, num_chunks, body, 0)

    @pl.when(i == pl.num_programs(1) - 1)
    def _():
        sum_ref[...] = jnp.sum(acc_ref[...], keepdims=True) * scale


# ---------------------------------------------------------------------------
# Wrapper helpers
# ---------------------------------------------------------------------------
def _lane_dense_view(n, c):
    """Metadata-only reshape target (rows, cols) with cols % 128 == 0, or None."""
    if c % 128 == 0:
        return None
    total = n * c
    for cols in (1024, 512, 256, 128):
        if total % cols == 0:
            return (total // cols, cols)
    return None


def _choose_row_tile(n, c, itemsize, target_bytes, max_rows=8192):
    rows = target_bytes // max(1, c * itemsize)
    rows = max(8, min(rows, max_rows))
    n_up = -(-n // 8) * 8                      # don't tile wider than ceil8(N)
    rows = min(rows, n_up)
    if rows >= 256:
        rows = (rows // 256) * 256             # keeps chunk offsets aligned
    else:
        rows = max(8, (rows // 8) * 8)
    return rows


def _choose_chunk(tn, c):
    """Row-chunk size (~256 KiB f32 intermediate), multiple of 8, divides tn."""
    desired = (256 * 1024) // max(1, c * 4)
    desired = max(8, min(desired, tn, 512))
    desired = max(8, (desired // 8) * 8)
    while tn % desired != 0:
        desired -= 8
    return desired


# ---------------------------------------------------------------------------
# Public entry point (matches BinaryFocalLoss.forward semantics).
# ---------------------------------------------------------------------------
def binary_focal_loss(output, target, *, alpha=0.75, gamma=2.0,
                      reduction="mean", smooth=1e-6, _row_tile=None):
    assert reduction in ("none", "mean", "sum")
    assert output.shape == target.shape and output.ndim == 2
    n, c = output.shape
    itemsize = jnp.dtype(output.dtype).itemsize

    # Lane-densify small / odd C via a metadata-only reshape of the contiguous
    # buffers (elementwise op; the global reduce is reshape-invariant).
    view = _lane_dense_view(n, c)
    if view is None:
        rows_n, cols_c = n, c
        out2d, tgt2d = output, target
    else:
        rows_n, cols_c = view
        out2d = output.reshape(rows_n, cols_c)
        tgt2d = target.reshape(rows_n, cols_c)

    if reduction == "none":
        # Conservative ~2 MiB f32-equivalent tiles: 3 arrays x 2 buffers plus
        # f32 intermediates stay well under the 32 MiB scoped limit.
        tn = _row_tile or _choose_row_tile(rows_n, cols_c, 4, 2 << 20)
        assert tn % 8 == 0
        n_tiles = pl.cdiv(rows_n, tn)
        kernel = functools.partial(_focal_none_kernel, alpha=float(alpha),
                                   gamma=float(gamma), smooth=float(smooth))
        loss2d = pl.pallas_call(
            kernel,
            out_shape=jax.ShapeDtypeStruct((rows_n, cols_c), output.dtype),
            grid_spec=pltpu.PrefetchScalarGridSpec(
                num_scalar_prefetch=0, grid=(n_tiles,),
                in_specs=[pl.BlockSpec((tn, cols_c), lambda i: (i, 0)),
                          pl.BlockSpec((tn, cols_c), lambda i: (i, 0))],
                out_specs=pl.BlockSpec((tn, cols_c), lambda i: (i, 0))),
            compiler_params=pltpu.CompilerParams(
                dimension_semantics=("parallel",),
                vmem_limit_bytes=_VMEM_LIMIT_BYTES),
        )(out2d, tgt2d)
        return loss2d if view is None else loss2d.reshape(n, c)

    # 'mean' / 'sum' ---------------------------------------------------------
    tn = _row_tile or _choose_row_tile(rows_n, cols_c, itemsize, 4 << 20)
    assert tn % 8 == 0
    chunk = _choose_chunk(tn, cols_c)
    total_tiles = pl.cdiv(rows_n, tn)
    num_splits = 2 if total_tiles >= 2 else 1   # lets v7x's 2 TCs split work
    tiles_per_split = pl.cdiv(total_tiles, num_splits)
    scale = 1.0 / (n * c) if reduction == "mean" else 1.0

    def row_map(s, i):
        blk = s * tiles_per_split + i
        # Clamp keeps the DMA in-bounds for odd tile counts; the kernel masks
        # the duplicate tile (its logical row indices are >= rows_n).
        return (jnp.minimum(blk, total_tiles - 1), 0)

    kernel = functools.partial(
        _focal_reduce_kernel, alpha=float(alpha), gamma=float(gamma),
        smooth=float(smooth), scale=float(scale), n_rows=rows_n, tn=tn,
        chunk=chunk, tiles_per_split=tiles_per_split)

    partials = pl.pallas_call(
        kernel,
        out_shape=jax.ShapeDtypeStruct((num_splits, 1), jnp.float32),
        grid_spec=pltpu.PrefetchScalarGridSpec(
            num_scalar_prefetch=0, grid=(num_splits, tiles_per_split),
            in_specs=[pl.BlockSpec((tn, cols_c), row_map),
                      pl.BlockSpec((tn, cols_c), row_map)],
            out_specs=pl.BlockSpec((1, 1), lambda s, i: (s, 0)),
            scratch_shapes=[pltpu.VMEM((8, cols_c), jnp.float32)]),
        compiler_params=pltpu.CompilerParams(
            dimension_semantics=("parallel", "arbitrary"),
            vmem_limit_bytes=_VMEM_LIMIT_BYTES),
    )(out2d, tgt2d)
    return jnp.sum(partials)   # scalar, matching torch's 0-d tensor


# ---------------------------------------------------------------------------
# Pure-JAX reference mirroring the PyTorch module (verification only).
# ---------------------------------------------------------------------------
def _ref_binary_focal_loss(output, target, *, alpha=0.75, gamma=2.0,
                           reduction="mean", smooth=1e-6):
    x = output.astype(jnp.float32)
    t = target.astype(jnp.float32)
    prob = jnp.clip(jax.nn.sigmoid(x), smooth, 1.0 - smooth)
    pos_mask = (t == 1.0).astype(jnp.float32)
    neg_mask = (t == 0.0).astype(jnp.float32)
    pos_loss = -alpha * pos_mask * jnp.power(1.0 - prob, gamma) * jnp.log(prob)
    neg_loss = -(1.0 - alpha) * neg_mask * jnp.power(prob, gamma) * \
        jax.nn.log_sigmoid(-x)
    loss = pos_loss + neg_loss
    if reduction == "mean":
        return loss.mean()
    if reduction == "sum":
        return loss.sum()
    return loss


if __name__ == "__main__":
    key = jax.random.PRNGKey(0)
    failures = []

    def check(name, logits, targets, reduction, rtol=1e-4, atol=1e-5, **kw):
        got = binary_focal_loss(logits, targets, alpha=0.75, gamma=2.0,
                                reduction=reduction, **kw)
        got = jax.block_until_ready(got)
        want = _ref_binary_focal_loss(logits, targets, alpha=0.75, gamma=2.0,
                                      reduction=reduction)
        if not jnp.allclose(got, want, rtol=rtol, atol=atol):
            failures.append(f"{name} reduction={reduction}: {got} vs {want}")

    # Case 1: lane-dense C, evenly tiled.
    k1, k2, key = jax.random.split(key, 3)
    x1 = jax.random.normal(k1, (64, 128), dtype=jnp.float32) * 2.0
    t1 = (jax.random.uniform(k2, (64, 128)) > 0.5).astype(jnp.float32)
    for r in ("mean", "sum", "none"):
        check("64x128_f32", x1, t1, r)

    # Case 2: ragged rows + forced small tile (multi-tile grid, in-kernel
    # tail masking, 2-way split with an even tile count).
    k1, k2, key = jax.random.split(key, 3)
    x2 = jax.random.normal(k1, (50, 256), dtype=jnp.float32) * 2.0
    t2 = (jax.random.uniform(k2, (50, 256)) > 0.5).astype(jnp.float32)
    for r in ("mean", "sum", "none"):
        check("50x256_f32_tile16", x2, t2, r, _row_tile=16)

    # Case 2b: odd tile count -> clamped duplicate tile must contribute zero.
    k1, k2, key = jax.random.split(key, 3)
    x2b = jax.random.normal(k1, (40, 256), dtype=jnp.float32) * 2.0
    t2b = (jax.random.uniform(k2, (40, 256)) > 0.5).astype(jnp.float32)
    for r in ("mean", "sum"):
        check("40x256_f32_tile16", x2b, t2b, r, _row_tile=16)

    # Case 3: tiny C -> lane-densified via metadata-only reshape.
    k1, k2, key = jax.random.split(key, 3)
    x3 = jax.random.normal(k1, (128, 3), dtype=jnp.float32) * 2.0
    t3 = (jax.random.uniform(k2, (128, 3)) > 0.5).astype(jnp.float32)
    for r in ("mean", "sum", "none"):
        check("128x3_f32", x3, t3, r)

    # Case 4: bf16 inputs end-to-end (reduce paths; f32 accumulation in-kernel).
    x4 = x1.astype(jnp.bfloat16)
    t4 = t1.astype(jnp.bfloat16)
    for r in ("mean", "sum"):
        check("64x128_bf16", x4, t4, r)

    if failures:
        for f in failures:
            print("MISMATCH", f)
    else:
        print("KERNEL_OK")
</pallas_src>

<mosaic_0001>
module attributes {stable_mosaic.version = 11 : i64} {
  func.func @_focal_reduce_kernel(%arg0: i32, %arg1: i32, %arg2: memref<64x128xf32, #tpu.memory_space<vmem>>, %arg3: memref<64x128xf32, #tpu.memory_space<vmem>>, %arg4: memref<1x1xf32, #tpu.memory_space<vmem>>, %arg5: memref<8x128xf32, #tpu.memory_space<vmem>>) attributes {dimension_semantics = [#tpu.dimension_semantics<parallel>, #tpu.dimension_semantics<arbitrary>], iteration_bounds = array<i64: 1, 1>, scalar_prefetch = 0 : i64, scratch_operands = 1 : i64, tpu.core_type = #tpu.core_type<tc>, window_params = [{transform_indices = @transform_0, window_bounds = array<i64: 64, 128>}, {transform_indices = @transform_1, window_bounds = array<i64: 64, 128>}, {transform_indices = @transform_2, window_bounds = array<i64: 1, 1>}]} {
    %c0_i32 = arith.constant 0 : i32
    %0 = arith.cmpi eq, %arg1, %c0_i32 : i32
    %1 = arith.extui %0 : i1 to i32
    %c0_i32_0 = arith.constant 0 : i32
    %2 = arith.cmpi ne, %1, %c0_i32_0 : i32
    scf.if %2 {
      %cst_29 = arith.constant 0.000000e+00 : f32
      %70 = vector.broadcast %cst_29 : f32 to vector<8x128xf32>
      %c0_30 = arith.constant 0 : index
      %c0_31 = arith.constant 0 : index
      %71 = vector.load %arg5[%c0_30, %c0_31] : memref<8x128xf32, #tpu.memory_space<vmem>>, vector<8x128xf32>
      tpu.vector_store %arg5[%c0_30, %c0_31], %70 {strides = array<i32>} : memref<8x128xf32, #tpu.memory_space<vmem>>, vector<8x128xf32>,
    } else {
    }
    %c1_i32 = arith.constant 1 : i32
    %3 = arith.muli %arg0, %c1_i32 : i32
    %4 = arith.addi %3, %arg1 : i32
    %c64_i32 = arith.constant 64 : i32
    %5 = arith.muli %4, %c64_i32 : i32
    %6 = tpu.iota {dimensions = array<i32: 0>} : vector<64x1xi32>
    %c0 = arith.constant 0 : index
    %c0_1 = arith.constant 0 : index
    %7 = vector.load %arg2[%c0, %c0_1] : memref<64x128xf32, #tpu.memory_space<vmem>>, vector<64x128xf32>
    %c0_2 = arith.constant 0 : index
    %c0_3 = arith.constant 0 : index
    %8 = vector.load %arg3[%c0_2, %c0_3] : memref<64x128xf32, #tpu.memory_space<vmem>>, vector<64x128xf32>
    %9 = math.absf %7 : vector<64x128xf32>
    %cst = arith.constant 0.000000e+00 : f32
    %10 = vector.broadcast %cst : f32 to vector<64x128xf32>
    %11 = arith.subf %10, %9 : vector<64x128xf32>
    %12 = math.exp %11 : vector<64x128xf32>
    %13 = math.log1p %12 : vector<64x128xf32>
    %cst_4 = arith.constant 0.000000e+00 : f32
    %14 = vector.broadcast %cst_4 : f32 to vector<64x128xf32>
    %15 = arith.minimumf %7, %14 : vector<64x128xf32>
    %16 = arith.subf %15, %13 : vector<64x128xf32>
    %17 = arith.subf %16, %7 : vector<64x128xf32>
    %cst_5 = arith.constant 1.000000e+00 : f32
    %18 = vector.broadcast %cst_5 : f32 to vector<64x128xf32>
    %19 = arith.addf %18, %12 : vector<64x128xf32>
    %20 = tpu.reciprocal %19 : vector<64x128xf32> -> vector<64x128xf32>
    %cst_6 = arith.constant 0.000000e+00 : f32
    %21 = vector.broadcast %cst_6 : f32 to vector<64x128xf32>
    %22 = arith.cmpf oge, %7, %21 : vector<64x128xf32>
    %cst_7 = arith.constant 1.000000e+00 : f32
    %23 = vector.broadcast %cst_7 : f32 to vector<64x128xf32>
    %24 = arith.subf %23, %20 : vector<64x128xf32>
    %25 = arith.select %22, %20, %24 : vector<64x128xi1>, vector<64x128xf32>
    %cst_8 = arith.constant 9.99999997E-7 : f32
    %cst_9 = arith.constant 0.999998986 : f32
    %26 = vector.broadcast %cst_8 : f32 to vector<64x128xf32>
    %27 = arith.maximumf %26, %25 : vector<64x128xf32>
    %28 = vector.broadcast %cst_9 : f32 to vector<64x128xf32>
    %29 = arith.minimumf %28, %27 : vector<64x128xf32>
    %cst_10 = arith.constant -13.8155107 : f32
    %cst_11 = arith.constant -1.00000045E-6 : f32
    %30 = vector.broadcast %cst_10 : f32 to vector<64x128xf32>
    %31 = arith.maximumf %30, %16 : vector<64x128xf32>
    %32 = vector.broadcast %cst_11 : f32 to vector<64x128xf32>
    %33 = arith.minimumf %32, %31 : vector<64x128xf32>
    %cst_12 = arith.constant 1.000000e+00 : f32
    %34 = vector.broadcast %cst_12 : f32 to vector<64x128xf32>
    %35 = arith.cmpf oeq, %8, %34 : vector<64x128xf32>
    %cst_13 = arith.constant 1.000000e+00 : f32
    %36 = vector.broadcast %cst_13 : f32 to vector<64x128xf32>
    %37 = arith.subf %36, %29 : vector<64x128xf32>
    %38 = arith.mulf %37, %37 : vector<64x128xf32>
    %cst_14 = arith.constant 0.000000e+00 : f32
    %39 = vector.broadcast %cst_14 : f32 to vector<64x128xf32>
    %40 = arith.select %35, %38, %39 : vector<64x128xi1>, vector<64x128xf32>
    %cst_15 = arith.constant 0.000000e+00 : f32
    %41 = vector.broadcast %cst_15 : f32 to vector<64x128xf32>
    %42 = arith.cmpf oeq, %8, %41 : vector<64x128xf32>
    %43 = arith.mulf %29, %29 : vector<64x128xf32>
    %cst_16 = arith.constant 0.000000e+00 : f32
    %44 = vector.broadcast %cst_16 : f32 to vector<64x128xf32>
    %45 = arith.select %42, %43, %44 : vector<64x128xi1>, vector<64x128xf32>
    %cst_17 = arith.constant -7.500000e-01 : f32
    %46 = vector.broadcast %cst_17 : f32 to vector<64x128xf32>
    %47 = arith.mulf %46, %40 : vector<64x128xf32>
    %48 = arith.mulf %47, %33 : vector<64x128xf32>
    %cst_18 = arith.constant -2.500000e-01 : f32
    %49 = vector.broadcast %cst_18 : f32 to vector<64x128xf32>
    %50 = arith.mulf %49, %45 : vector<64x128xf32>
    %51 = arith.mulf %50, %17 : vector<64x128xf32>
    %52 = arith.addf %48, %51 : vector<64x128xf32>
    %c0_i32_19 = arith.constant 0 : i32
    %53 = arith.addi %5, %c0_i32_19 : i32
    %54 = vector.broadcast %53 : i32 to vector<64x1xi32>
    %55 = arith.addi %54, %6 : vector<64x1xi32>
    %c64_i32_20 = arith.constant 64 : i32
    %56 = vector.broadcast %c64_i32_20 : i32 to vector<64x1xi32>
    %57 = arith.cmpi slt, %55, %56 : vector<64x1xi32>
    %cst_21 = arith.constant 0.000000e+00 : f32
    %58 = vector.shape_cast %57 : vector<64x1xi1> to vector<64x1xi1>
    %59 = vector.broadcast %58 : vector<64x1xi1> to vector<64x128xi1>
    %60 = vector.broadcast %cst_21 : f32 to vector<64x128xf32>
    %61 = arith.select %59, %52, %60 : vector<64x128xi1>, vector<64x128xf32>
    %c0_22 = arith.constant 0 : index
    %c0_23 = arith.constant 0 : index
    %62 = vector.load %arg5[%c0_22, %c0_23] : memref<8x128xf32, #tpu.memory_space<vmem>>, vector<8x128xf32>
    %63 = vector.shape_cast %61 : vector<64x128xf32> to vector<8x8x128xf32>
    %cst_24 = arith.constant dense<0.000000e+00> : vector<8x128xf32>
    %64 = vector.multi_reduction <add>, %63, %cst_24 [0] : vector<8x8x128xf32> to vector<8x128xf32>
    %65 = arith.addf %62, %64 : vector<8x128xf32>
    %c0_25 = arith.constant 0 : index
    %c0_26 = arith.constant 0 : index
    %66 = vector.load %arg5[%c0_25, %c0_26] : memref<8x128xf32, #tpu.memory_space<vmem>>, vector<8x128xf32>
    tpu.vector_store %arg5[%c0_25, %c0_26], %65 {strides = array<i32>} : memref<8x128xf32, #tpu.memory_space<vmem>>, vector<8x128xf32>,
    %c0_i32_27 = arith.constant 0 : i32
    %67 = arith.cmpi eq, %arg1, %c0_i32_27 : i32
    %68 = arith.extui %67 : i1 to i32
    %c0_i32_28 = arith.constant 0 : i32
    %69 = arith.cmpi ne, %68, %c0_i32_28 : i32
    scf.if %69 {
      %c0_29 = arith.constant 0 : index
      %c0_30 = arith.constant 0 : index
      %70 = vector.load %arg5[%c0_29, %c0_30] : memref<8x128xf32, #tpu.memory_space<vmem>>, vector<8x128xf32>
      %71 = vector.shape_cast %70 : vector<8x128xf32> to vector<1x8x128xf32>
      %cst_31 = arith.constant dense<0.000000e+00> : vector<1xf32>
      %72 = vector.multi_reduction <add>, %71, %cst_31 [1, 2] : vector<1x8x128xf32> to vector<1xf32>
      %73 = vector.shape_cast %72 : vector<1xf32> to vector<1x1x1xf32>
      %74 = vector.extract %73[0, 0, 0] : f32 from vector<1x1x1xf32>
      %75 = vector.broadcast %74 : f32 to vector<1x1xf32>
      %cst_32 = arith.constant 1.22070313E-4 : f32
      %76 = vector.broadcast %cst_32 : f32 to vector<1x1xf32>
      %77 = arith.mulf %75, %76 : vector<1x1xf32>
      %c0_33 = arith.constant 0 : index
      %c0_34 = arith.constant 0 : index
      %78 = vector.load %arg4[%c0_33, %c0_34] : memref<1x1xf32, #tpu.memory_space<vmem>>, vector<1x1xf32>
      tpu.vector_store %arg4[%c0_33, %c0_34], %77 {strides = array<i32>} : memref<1x1xf32, #tpu.memory_space<vmem>>, vector<1x1xf32>,
    } else {
    }
    return
  }
  func.func @transform_0(%arg0: i32, %arg1: i32) -> (i32, i32) {
    %c1_i32 = arith.constant 1 : i32
    %0 = arith.muli %arg0, %c1_i32 : i32
    %1 = arith.addi %0, %arg1 : i32
    %c0_i32 = arith.constant 0 : i32
    %2 = arith.minsi %1, %c0_i32 : i32
    %c0_i32_0 = arith.constant 0 : i32
    %c0_i32_1 = arith.constant 0 : i32
    return %2, %c0_i32_0 : i32, i32
  }
  func.func @transform_1(%arg0: i32, %arg1: i32) -> (i32, i32) {
    %c1_i32 = arith.constant 1 : i32
    %0 = arith.muli %arg0, %c1_i32 : i32
    %1 = arith.addi %0, %arg1 : i32
    %c0_i32 = arith.constant 0 : i32
    %2 = arith.minsi %1, %c0_i32 : i32
    %c0_i32_0 = arith.constant 0 : i32
    %c0_i32_1 = arith.constant 0 : i32
    return %2, %c0_i32_0 : i32, i32
  }
  func.func @transform_2(%arg0: i32, %arg1: i32) -> (i32, i32) {
    %c0_i32 = arith.constant 0 : i32
    %c0_i32_0 = arith.constant 0 : i32
    return %arg0, %c0_i32 : i32, i32
  }
}

</mosaic_0001>

<llo_original>
// kernel: tpu_custom_call.1
$region0: #{tpu_custom_call.1}
  #allocation0 [shape = 'u32[]', space=smem, size = 0x4, offset = 0x4, fixed_abs, tag = 'smem constant byte address 0x4 - core index']
  #allocation1 [shape = 'u32[72,128]{1,0:T(1,128)}', space=vmem, size = 0x9000, scoped, tag = 'internal scratch']
  #allocation2 [shape = 'f32[8,128]{1,0:T(8,128)}', space=vmem, size = 0x1000, scoped, tag = 'scratch operand']
  %s0 = inlined_call_operand.hbm [shape: f32[64,128], index: 0, kind: input, shape index: {}]
  %s1 = inlined_call_operand.hbm [shape: f32[64,128], index: 1, kind: input, shape index: {}]
  %s2 = inlined_call_operand.hbm [shape: f32[1,1], index: 2, kind: output, shape index: {}]
  %s3 = sld [smem:[#allocation0]]
  $region34: #{tpu_custom_call.1} parent=0
    _
  %s5 = ssub.s32 1, %s3
  %s6 = scalar_select 0, %s5, %s3
  $region1: #{tpu_custom_call.1} parent=0
    #allocation3 [shape = 'u8[32768]{0}', space=vmem, size = 0x8000, scoped, tag = 'input window, operand 0, single buffered']
    #allocation4 [shape = 's32[1]{0}', space=sflag, size = 0x4, scoped, tag = 'scoped memory for tpu_custom_call.1']
    #allocation5 [shape = 's32[1]{0}', space=sflag, size = 0x4, scoped, tag = 'scoped memory for tpu_custom_call.1']
    #allocation6 [shape = 'u8[32768]{0}', space=vmem, size = 0x8000, scoped, tag = 'input window, operand 1, single buffered']
    #allocation7 [shape = 's32[1]{0}', space=sflag, size = 0x4, scoped, tag = 'scoped memory for tpu_custom_call.1']
    #allocation8 [shape = 'u8[512]{0}', space=vmem, size = 0x400, scoped, tag = 'output window, operand 0, single buffered']
    %7 = vsyncpa [#allocation4], 0
    %8 = vsyncpa [#allocation7], 0
    %9 = vsyncpa [#allocation5], 0
    // Predicated region
    $region2: #{tpu_custom_call.1} parent=1 // pred_check
      _
    $region3: #{tpu_custom_call.1} parent=1 // pred_check_branch
      %11 = sbr.rel (0) target = $region5
    $region4: #{tpu_custom_call.1} parent=1 // pred_region
      %s12 = sadd.s32 0, 0
      %p13 = scmp.lt.s32.totalorder %s12, 0
      %s14 = scalar_select %p13, %s12, 0
      %s15 = smul.u32 8, %s14
      %17 = vsyncadd [#allocation4], 0
      %s18 = smul.addr %s15, 8
      %s19 = scalar_lea.hbm %s0, %s18
      %s20 = sshll.u32 %s19, 4
      %s21 = int_to_ptr.hbm [resolvable:$true] %s20
      %s22 = sshll.u32 [#allocation3], 4
      %s23 = int_to_ptr.vmem [resolvable:$true] %s22
      %28 = dma.hbm_to_vmem [thread:$0]  %s21, 1024, %s23, [#allocation4], 128, 128, 8
    $region5: #{tpu_custom_call.1} parent=1 // pred_fallthru
      _
    // Predicated region
    $region6: #{tpu_custom_call.1} parent=1 // pred_check
      _
    $region7: #{tpu_custom_call.1} parent=1 // pred_check_branch
      %30 = sbr.rel (0) target = $region9
    $region8: #{tpu_custom_call.1} parent=1 // pred_region
      %s31 = sadd.s32 0, 0
      %p32 = scmp.lt.s32.totalorder %s31, 0
      %s33 = scalar_select %p32, %s31, 0
      %s34 = smul.u32 8, %s33
      %36 = vsyncadd [#allocation7], 0
      %s37 = smul.addr %s34, 8
      %s38 = scalar_lea.hbm %s1, %s37
      %s39 = sshll.u32 %s38, 4
      %s40 = int_to_ptr.hbm [resolvable:$true] %s39
      %s41 = sshll.u32 [#allocation6], 4
      %s42 = int_to_ptr.vmem [resolvable:$true] %s41
      %47 = dma.hbm_to_vmem [thread:$0]  %s40, 1024, %s42, [#allocation7], 128, 128, 8
    $region9: #{tpu_custom_call.1} parent=1 // pred_fallthru
      _
    // Predicated region
    $region10: #{tpu_custom_call.1} parent=1 // pred_check
      _
    $region11: #{tpu_custom_call.1} parent=1 // pred_check_branch
      %49 = sbr.rel (0) target = $region13
    $region12: #{tpu_custom_call.1} parent=1 // pred_region
      %51 = dma.done [#allocation4], 1024
    $region13: #{tpu_custom_call.1} parent=1 // pred_fallthru
      _
    // Predicated region
    $region14: #{tpu_custom_call.1} parent=1 // pred_check
      _
    $region15: #{tpu_custom_call.1} parent=1 // pred_check_branch
      %53 = sbr.rel (0) target = $region17
    $region16: #{tpu_custom_call.1} parent=1 // pred_region
      %55 = dma.done [#allocation7], 1024
    $region17: #{tpu_custom_call.1} parent=1 // pred_fallthru
      _
    %s56 = sadd.s32 0, 0
    %p57 = scmp.lt.s32.totalorder %s56, 0
    %s58 = scalar_select %p57, %s56, 0
    %s59 = smul.u32 8, %s58
    %s60 = sadd.s32 0, 0
    %p61 = scmp.lt.s32.totalorder %s60, 0
    %s62 = scalar_select %p61, %s60, 0
    %s63 = smul.u32 8, %s62
    %p64 = scmp.eq.s32.totalorder 0, 0
    // Predicated region
    $region18: #{tpu_custom_call.1} parent=1 // pred_check
      %p65 = pneg %p64
    $region19: #{tpu_custom_call.1} parent=1 // pred_check_branch
      %67 = sbr.rel (%p65) target = $region21
    $region20: #{tpu_custom_call.1} parent=1 // pred_region
      %68 = vst [vmem:[#allocation2] sm:$0xff] 0.0
    $region21: #{tpu_custom_call.1} parent=1 // pred_fallthru
      _
    %s69 = sadd.s32 0, 0
    %s70 = smul.u32 %s69, 64
    %v71 = vlaneseq
    %v72 = vshrl.u32 %v71, 7
    %v73 = vadd.s32 %v72, 8
    %v74 = vadd.s32 %v72, 16
    %v75 = vadd.s32 %v72, 24
    %v76 = vadd.s32 %v72, 32
    %v77 = vadd.s32 %v72, 40
    %v78 = vadd.s32 %v72, 48
    %v79 = vadd.s32 %v72, 56
    %v80 = vld [vmem:[#allocation3] sm:$0xff]
    %v81 = vld [vmem:[#allocation3 + $0x8] sm:$0xff]
    %v82 = vld [vmem:[#allocation3 + $0x10] sm:$0xff]
    %v83 = vld [vmem:[#allocation3 + $0x18] sm:$0xff]
    %v84 = vld [vmem:[#allocation3 + $0x20] sm:$0xff]
    %v85 = vld [vmem:[#allocation3 + $0x28] sm:$0xff]
    %v86 = vld [vmem:[#allocation3 + $0x30] sm:$0xff]
    %v87 = vld [vmem:[#allocation3 + $0x38] sm:$0xff]
    %v88 = vld [vmem:[#allocation6] sm:$0xff]
    %v89 = vld [vmem:[#allocation6 + $0x8] sm:$0xff]
    %v90 = vld [vmem:[#allocation6 + $0x10] sm:$0xff]
    %v91 = vld [vmem:[#allocation6 + $0x18] sm:$0xff]
    %v92 = vld [vmem:[#allocation6 + $0x20] sm:$0xff]
    %v93 = vld [vmem:[#allocation6 + $0x28] sm:$0xff]
    %v94 = vld [vmem:[#allocation6 + $0x30] sm:$0xff]
    %v95 = vld [vmem:[#allocation6 + $0x38] sm:$0xff]
    %v96 = vand.u32 2147483647, %v80
    %v97 = vand.u32 2147483647, %v81
    %v98 = vand.u32 2147483647, %v82
    %v99 = vand.u32 2147483647, %v83
    %v100 = vand.u32 2147483647, %v84
    %v101 = vand.u32 2147483647, %v85
    %v102 = vand.u32 2147483647, %v86
    %v103 = vand.u32 2147483647, %v87
    %v104 = vsub.f32 0.0, %v96
    %v105 = vsub.f32 0.0, %v97
    %v106 = vsub.f32 0.0, %v98
    %v107 = vsub.f32 0.0, %v99
    %v108 = vsub.f32 0.0, %v100
    %v109 = vsub.f32 0.0, %v101
    %v110 = vsub.f32 0.0, %v102
    %v111 = vsub.f32 0.0, %v103
    %v112 = vmul.f32 %v104, 1.442695
    %v113 = vpow.pop %v112
    %v114 = vmul.f32 %v105, 1.442695
    %v115 = vpow.pop %v114
    %v116 = vmul.f32 %v106, 1.442695
    %v117 = vpow.pop %v116
    %v118 = vmul.f32 %v107, 1.442695
    %v119 = vpow.pop %v118
    %v120 = vmul.f32 %v108, 1.442695
    %v121 = vpow.pop %v120
    %v122 = vmul.f32 %v109, 1.442695
    %v123 = vpow.pop %v122
    %v124 = vmul.f32 %v110, 1.442695
    %v125 = vpow.pop %v124
    %v126 = vmul.f32 %v111, 1.442695
    %v127 = vpow.pop %v126
    %v128 = vadd.f32 %v113, 1.0
    %v129 = vlog2.pop %v128
    %v130 = vmul.f32 %v129, 0.6931472
    %v131 = vmul.f32 -0.5, %v113
    %v132 = vadd.f32 %v131, 1.0
    %v133 = vmul.f32 %v132, %v113
    %v134 = vand.u32 2147483647, %v113
    %vm135 = vcmp.lt.f32.partialorder %v134, 0.0004427343
    %v136 = vsel %vm135, %v133, %v130
    %v137 = vadd.f32 %v115, 1.0
    %v138 = vlog2.pop %v137
    %v139 = vmul.f32 %v138, 0.6931472
    %v140 = vmul.f32 -0.5, %v115
    %v141 = vadd.f32 %v140, 1.0
    %v142 = vmul.f32 %v141, %v115
    %v143 = vand.u32 2147483647, %v115
    %vm144 = vcmp.lt.f32.partialorder %v143, 0.0004427343
    %v145 = vsel %vm144, %v142, %v139
    %v146 = vadd.f32 %v117, 1.0
    %v147 = vlog2.pop %v146
    %v148 = vmul.f32 %v147, 0.6931472
    %v149 = vmul.f32 -0.5, %v117
    %v150 = vadd.f32 %v149, 1.0
    %v151 = vmul.f32 %v150, %v117
    %v152 = vand.u32 2147483647, %v117
    %vm153 = vcmp.lt.f32.partialorder %v152, 0.0004427343
    %v154 = vsel %vm153, %v151, %v148
    %v155 = vadd.f32 %v119, 1.0
    %v156 = vlog2.pop %v155
    %v157 = vmul.f32 %v156, 0.6931472
    %v158 = vmul.f32 -0.5, %v119
    %v159 = vadd.f32 %v158, 1.0
    %v160 = vmul.f32 %v159, %v119
    %v161 = vand.u32 2147483647, %v119
    %vm162 = vcmp.lt.f32.partialorder %v161, 0.0004427343
    %v163 = vsel %vm162, %v160, %v157
    %v164 = vadd.f32 %v121, 1.0
    %v165 = vlog2.pop %v164
    %v166 = vmul.f32 %v165, 0.6931472
    %v167 = vmul.f32 -0.5, %v121
    %v168 = vadd.f32 %v167, 1.0
    %v169 = vmul.f32 %v168, %v121
    %v170 = vand.u32 2147483647, %v121
    %vm171 = vcmp.lt.f32.partialorder %v170, 0.0004427343
    %v172 = vsel %vm171, %v169, %v166
    %v173 = vadd.f32 %v123, 1.0
    %v174 = vlog2.pop %v173
    %v175 = vmul.f32 %v174, 0.6931472
    %v176 = vmul.f32 -0.5, %v123
    %v177 = vadd.f32 %v176, 1.0
    %v178 = vmul.f32 %v177, %v123
    %v179 = vand.u32 2147483647, %v123
    %vm180 = vcmp.lt.f32.partialorder %v179, 0.0004427343
    %v181 = vsel %vm180, %v178, %v175
    %v182 = vadd.f32 %v125, 1.0
    %v183 = vlog2.pop %v182
    %v184 = vmul.f32 %v183, 0.6931472
    %v185 = vmul.f32 -0.5, %v125
    %v186 = vadd.f32 %v185, 1.0
    %v187 = vmul.f32 %v186, %v125
    %v188 = vand.u32 2147483647, %v125
    %vm189 = vcmp.lt.f32.partialorder %v188, 0.0004427343
    %v190 = vsel %vm189, %v187, %v184
    %v191 = vadd.f32 %v127, 1.0
    %v192 = vlog2.pop %v191
    %v193 = vmul.f32 %v192, 0.6931472
    %v194 = vmul.f32 -0.5, %v127
    %v195 = vadd.f32 %v194, 1.0
    %v196 = vmul.f32 %v195, %v127
    %v197 = vand.u32 2147483647, %v127
    %vm198 = vcmp.lt.f32.partialorder %v197, 0.0004427343
    %v199 = vsel %vm198, %v196, %v193
    %v200 = vmin.f32 %v80, 0.0
    %v201 = vmin.f32 %v81, 0.0
    %v202 = vmin.f32 %v82, 0.0
    %v203 = vmin.f32 %v83, 0.0
    %v204 = vmin.f32 %v84, 0.0
    %v205 = vmin.f32 %v85, 0.0
    %v206 = vmin.f32 %v86, 0.0
    %v207 = vmin.f32 %v87, 0.0
    %v208 = vsub.f32 %v200, %v136
    %v209 = vsub.f32 %v201, %v145
    %v210 = vsub.f32 %v202, %v154
    %v211 = vsub.f32 %v203, %v163
    %v212 = vsub.f32 %v204, %v172
    %v213 = vsub.f32 %v205, %v181
    %v214 = vsub.f32 %v206, %v190
    %v215 = vsub.f32 %v207, %v199
    %v216 = vsub.f32 %v208, %v80
    %v217 = vsub.f32 %v209, %v81
    %v218 = vsub.f32 %v210, %v82
    %v219 = vsub.f32 %v211, %v83
    %v220 = vsub.f32 %v212, %v84
    %v221 = vsub.f32 %v213, %v85
    %v222 = vsub.f32 %v214, %v86
    %v223 = vsub.f32 %v215, %v87
    %v224 = vadd.f32 %v113, 1.0
    %v225 = vadd.f32 %v115, 1.0
    %v226 = vadd.f32 %v117, 1.0
    %v227 = vadd.f32 %v119, 1.0
    %v228 = vadd.f32 %v121, 1.0
    %v229 = vadd.f32 %v123, 1.0
    %v230 = vadd.f32 %v125, 1.0
    %v231 = vadd.f32 %v127, 1.0
    %v232 = vrcp.pop %v224
    %v233 = vmul.f32 %v224, %v232
    %v234 = vsub.f32 1.0, %v233
    %v235 = vmul.f32 %v232, %v234
    %v236 = vadd.f32 %v232, %v235
    %vm237 = vweird.f32 %v224
    %vm238 = vweird.f32 %v232
    %vm239 = vmor %vm237, %vm238
    %v240 = vsel %vm239, %v232, %v236
    %v241 = vand.u32 2147483647, %v224
    %vm242 = vcmp.eq.f32.partialorder %v241, 8.507059e+37
    %v243 = vand.u32 %v224, 2147483648
    %v244 = vor.u32 1.1754944e-38, %v243
    %v245 = vsel %vm242, %v244, %v240
    %v246 = vrcp.pop %v225
    %v247 = vmul.f32 %v225, %v246
    %v248 = vsub.f32 1.0, %v247
    %v249 = vmul.f32 %v246, %v248
    %v250 = vadd.f32 %v246, %v249
    %vm251 = vweird.f32 %v225
    %vm252 = vweird.f32 %v246
    %vm253 = vmor %vm251, %vm252
    %v254 = vsel %vm253, %v246, %v250
    %v255 = vand.u32 2147483647, %v225
    %vm256 = vcmp.eq.f32.partialorder %v255, 8.507059e+37
    %v257 = vand.u32 %v225, 2147483648
    %v258 = vor.u32 1.1754944e-38, %v257
    %v259 = vsel %vm256, %v258, %v254
    %v260 = vrcp.pop %v226
    %v261 = vmul.f32 %v226, %v260
    %v262 = vsub.f32 1.0, %v261
    %v263 = vmul.f32 %v260, %v262
    %v264 = vadd.f32 %v260, %v263
    %vm265 = vweird.f32 %v226
    %vm266 = vweird.f32 %v260
    %vm267 = vmor %vm265, %vm266
    %v268 = vsel %vm267, %v260, %v264
    %v269 = vand.u32 2147483647, %v226
    %vm270 = vcmp.eq.f32.partialorder %v269, 8.507059e+37
    %v271 = vand.u32 %v226, 2147483648
    %v272 = vor.u32 1.1754944e-38, %v271
    %v273 = vsel %vm270, %v272, %v268
    %v274 = vrcp.pop %v227
    %v275 = vmul.f32 %v227, %v274
    %v276 = vsub.f32 1.0, %v275
    %v277 = vmul.f32 %v274, %v276
    %v278 = vadd.f32 %v274, %v277
    %vm279 = vweird.f32 %v227
    %vm280 = vweird.f32 %v274
    %vm281 = vmor %vm279, %vm280
    %v282 = vsel %vm281, %v274, %v278
    %v283 = vand.u32 2147483647, %v227
    %vm284 = vcmp.eq.f32.partialorder %v283, 8.507059e+37
    %v285 = vand.u32 %v227, 2147483648
    %v286 = vor.u32 1.1754944e-38, %v285
    %v287 = vsel %vm284, %v286, %v282
    %v288 = vrcp.pop %v228
    %v289 = vmul.f32 %v228, %v288
    %v290 = vsub.f32 1.0, %v289
    %v291 = vmul.f32 %v288, %v290
    %v292 = vadd.f32 %v288, %v291
    %vm293 = vweird.f32 %v228
    %vm294 = vweird.f32 %v288
    %vm295 = vmor %vm293, %vm294
    %v296 = vsel %vm295, %v288, %v292
    %v297 = vand.u32 2147483647, %v228
    %vm298 = vcmp.eq.f32.partialorder %v297, 8.507059e+37
    %v299 = vand.u32 %v228, 2147483648
    %v300 = vor.u32 1.1754944e-38, %v299
    %v301 = vsel %vm298, %v300, %v296
    %v302 = vrcp.pop %v229
    %v303 = vmul.f32 %v229, %v302
    %v304 = vsub.f32 1.0, %v303
    %v305 = vmul.f32 %v302, %v304
    %v306 = vadd.f32 %v302, %v305
    %vm307 = vweird.f32 %v229
    %vm308 = vweird.f32 %v302
    %vm309 = vmor %vm307, %vm308
    %v310 = vsel %vm309, %v302, %v306
    %v311 = vand.u32 2147483647, %v229
    %vm312 = vcmp.eq.f32.partialorder %v311, 8.507059e+37
    %v313 = vand.u32 %v229, 2147483648
    %v314 = vor.u32 1.1754944e-38, %v313
    %v315 = vsel %vm312, %v314, %v310
    %v316 = vrcp.pop %v230
    %v317 = vmul.f32 %v230, %v316
    %v318 = vsub.f32 1.0, %v317
    %v319 = vmul.f32 %v316, %v318
    %v320 = vadd.f32 %v316, %v319
    %vm321 = vweird.f32 %v230
    %vm322 = vweird.f32 %v316
    %vm323 = vmor %vm321, %vm322
    %v324 = vsel %vm323, %v316, %v320
    %v325 = vand.u32 2147483647, %v230
    %vm326 = vcmp.eq.f32.partialorder %v325, 8.507059e+37
    %v327 = vand.u32 %v230, 2147483648
    %v328 = vor.u32 1.1754944e-38, %v327
    %v329 = vsel %vm326, %v328, %v324
    %v330 = vrcp.pop %v231
    %v331 = vmul.f32 %v231, %v330
    %v332 = vsub.f32 1.0, %v331
    %v333 = vmul.f32 %v330, %v332
    %v334 = vadd.f32 %v330, %v333
    %vm335 = vweird.f32 %v231
    %vm336 = vweird.f32 %v330
    %vm337 = vmor %vm335, %vm336
    %v338 = vsel %vm337, %v330, %v334
    %v339 = vand.u32 2147483647, %v231
    %vm340 = vcmp.eq.f32.partialorder %v339, 8.507059e+37
    %v341 = vand.u32 %v231, 2147483648
    %v342 = vor.u32 1.1754944e-38, %v341
    %v343 = vsel %vm340, %v342, %v338
    %vm344 = vcmp.ge.f32.partialorder %v80, 0.0
    %vm345 = vcmp.ge.f32.partialorder %v81, 0.0
    %vm346 = vcmp.ge.f32.partialorder %v82, 0.0
    %vm347 = vcmp.ge.f32.partialorder %v83, 0.0
    %vm348 = vcmp.ge.f32.partialorder %v84, 0.0
    %vm349 = vcmp.ge.f32.partialorder %v85, 0.0
    %vm350 = vcmp.ge.f32.partialorder %v86, 0.0
    %vm351 = vcmp.ge.f32.partialorder %v87, 0.0
    %v352 = vsub.f32 1.0, %v245
    %v353 = vsub.f32 1.0, %v259
    %v354 = vsub.f32 1.0, %v273
    %v355 = vsub.f32 1.0, %v287
    %v356 = vsub.f32 1.0, %v301
    %v357 = vsub.f32 1.0, %v315
    %v358 = vsub.f32 1.0, %v329
    %v359 = vsub.f32 1.0, %v343
    %v360 = vsel %vm344, %v245, %v352
    %v361 = vsel %vm345, %v259, %v353
    %v362 = vsel %vm346, %v273, %v354
    %v363 = vsel %vm347, %v287, %v355
    %v364 = vsel %vm348, %v301, %v356
    %v365 = vsel %vm349, %v315, %v357
    %v366 = vsel %vm350, %v329, %v358
    %v367 = vsel %vm351, %v343, %v359
    %v368 = vmax.f32 %v360, 1e-06
    %v369 = vmax.f32 %v361, 1e-06
    %v370 = vmax.f32 %v362, 1e-06
    %v371 = vmax.f32 %v363, 1e-06
    %v372 = vmax.f32 %v364, 1e-06
    %v373 = vmax.f32 %v365, 1e-06
    %v374 = vmax.f32 %v366, 1e-06
    %v375 = vmax.f32 %v367, 1e-06
    %v376 = vmin.f32 %v368, 0.999999
    %v377 = vmin.f32 %v369, 0.999999
    %v378 = vmin.f32 %v370, 0.999999
    %v379 = vmin.f32 %v371, 0.999999
    %v380 = vmin.f32 %v372, 0.999999
    %v381 = vmin.f32 %v373, 0.999999
    %v382 = vmin.f32 %v374, 0.999999
    %v383 = vmin.f32 %v375, 0.999999
    %v384 = vmax.f32 %v208, -13.815511
    %v385 = vmax.f32 %v209, -13.815511
    %v386 = vmax.f32 %v210, -13.815511
    %v387 = vmax.f32 %v211, -13.815511
    %v388 = vmax.f32 %v212, -13.815511
    %v389 = vmax.f32 %v213, -13.815511
    %v390 = vmax.f32 %v214, -13.815511
    %v391 = vmax.f32 %v215, -13.815511
    %v392 = vmin.f32 %v384, -1.0000005e-06
    %v393 = vmin.f32 %v385, -1.0000005e-06
    %v394 = vmin.f32 %v386, -1.0000005e-06
    %v395 = vmin.f32 %v387, -1.0000005e-06
    %v396 = vmin.f32 %v388, -1.0000005e-06
    %v397 = vmin.f32 %v389, -1.0000005e-06
    %v398 = vmin.f32 %v390, -1.0000005e-06
    %v399 = vmin.f32 %v391, -1.0000005e-06
    %vm400 = vcmp.eq.f32.partialorder %v88, 1.0
    %vm401 = vcmp.eq.f32.partialorder %v89, 1.0
    %vm402 = vcmp.eq.f32.partialorder %v90, 1.0
    %vm403 = vcmp.eq.f32.partialorder %v91, 1.0
    %vm404 = vcmp.eq.f32.partialorder %v92, 1.0
    %vm405 = vcmp.eq.f32.partialorder %v93, 1.0
    %vm406 = vcmp.eq.f32.partialorder %v94, 1.0
    %vm407 = vcmp.eq.f32.partialorder %v95, 1.0
    %v408 = vsub.f32 1.0, %v376
    %v409 = vsub.f32 1.0, %v377
    %v410 = vsub.f32 1.0, %v378
    %v411 = vsub.f32 1.0, %v379
    %v412 = vsub.f32 1.0, %v380
    %v413 = vsub.f32 1.0, %v381
    %v414 = vsub.f32 1.0, %v382
    %v415 = vsub.f32 1.0, %v383
    %v416 = vmul.f32 %v408, %v408
    %v417 = vmul.f32 %v409, %v409
    %v418 = vmul.f32 %v410, %v410
    %v419 = vmul.f32 %v411, %v411
    %v420 = vmul.f32 %v412, %v412
    %v421 = vmul.f32 %v413, %v413
    %v422 = vmul.f32 %v414, %v414
    %v423 = vmul.f32 %v415, %v415
    %v424 = vsel %vm400, %v416, 0.0
    %v425 = vsel %vm401, %v417, 0.0
    %v426 = vsel %vm402, %v418, 0.0
    %v427 = vsel %vm403, %v419, 0.0
    %v428 = vsel %vm404, %v420, 0.0
    %v429 = vsel %vm405, %v421, 0.0
    %v430 = vsel %vm406, %v422, 0.0
    %v431 = vsel %vm407, %v423, 0.0
    %vm432 = vcmp.eq.f32.partialorder %v88, 0.0
    %vm433 = vcmp.eq.f32.partialorder %v89, 0.0
    %vm434 = vcmp.eq.f32.partialorder %v90, 0.0
    %vm435 = vcmp.eq.f32.partialorder %v91, 0.0
    %vm436 = vcmp.eq.f32.partialorder %v92, 0.0
    %vm437 = vcmp.eq.f32.partialorder %v93, 0.0
    %vm438 = vcmp.eq.f32.partialorder %v94, 0.0
    %vm439 = vcmp.eq.f32.partialorder %v95, 0.0
    %v440 = vmul.f32 %v376, %v376
    %v441 = vmul.f32 %v377, %v377
    %v442 = vmul.f32 %v378, %v378
    %v443 = vmul.f32 %v379, %v379
    %v444 = vmul.f32 %v380, %v380
    %v445 = vmul.f32 %v381, %v381
    %v446 = vmul.f32 %v382, %v382
    %v447 = vmul.f32 %v383, %v383
    %v448 = vsel %vm432, %v440, 0.0
    %v449 = vsel %vm433, %v441, 0.0
    %v450 = vsel %vm434, %v442, 0.0
    %v451 = vsel %vm435, %v443, 0.0
    %v452 = vsel %vm436, %v444, 0.0
    %v453 = vsel %vm437, %v445, 0.0
    %v454 = vsel %vm438, %v446, 0.0
    %v455 = vsel %vm439, %v447, 0.0
    %v456 = vmul.f32 %v424, -0.75
    %v457 = vmul.f32 %v425, -0.75
    %v458 = vmul.f32 %v426, -0.75
    %v459 = vmul.f32 %v427, -0.75
    %v460 = vmul.f32 %v428, -0.75
    %v461 = vmul.f32 %v429, -0.75
    %v462 = vmul.f32 %v430, -0.75
    %v463 = vmul.f32 %v431, -0.75
    %v464 = vmul.f32 %v456, %v392
    %v465 = vmul.f32 %v457, %v393
    %v466 = vmul.f32 %v458, %v394
    %v467 = vmul.f32 %v459, %v395
    %v468 = vmul.f32 %v460, %v396
    %v469 = vmul.f32 %v461, %v397
    %v470 = vmul.f32 %v462, %v398
    %v471 = vmul.f32 %v463, %v399
    %v472 = vmul.f32 %v448, -0.25
    %v473 = vmul.f32 %v449, -0.25
    %v474 = vmul.f32 %v450, -0.25
    %v475 = vmul.f32 %v451, -0.25
    %v476 = vmul.f32 %v452, -0.25
    %v477 = vmul.f32 %v453, -0.25
    %v478 = vmul.f32 %v454, -0.25
    %v479 = vmul.f32 %v455, -0.25
    %v480 = vmul.f32 %v472, %v216
    %v481 = vmul.f32 %v473, %v217
    %v482 = vmul.f32 %v474, %v218
    %v483 = vmul.f32 %v475, %v219
    %v484 = vmul.f32 %v476, %v220
    %v485 = vmul.f32 %v477, %v221
    %v486 = vmul.f32 %v478, %v222
    %v487 = vmul.f32 %v479, %v223
    %v488 = vadd.f32 %v464, %v480
    %v489 = vadd.f32 %v465, %v481
    %v490 = vadd.f32 %v466, %v482
    %v491 = vadd.f32 %v467, %v483
    %v492 = vadd.f32 %v468, %v484
    %v493 = vadd.f32 %v469, %v485
    %v494 = vadd.f32 %v470, %v486
    %v495 = vadd.f32 %v471, %v487
    %v496 = vstv %s70
    %v497 = vadd.s32 %v496, %v72
    %v498 = vadd.s32 %v496, %v73
    %v499 = vadd.s32 %v496, %v74
    %v500 = vadd.s32 %v496, %v75
    %v501 = vadd.s32 %v496, %v76
    %v502 = vadd.s32 %v496, %v77
    %v503 = vadd.s32 %v496, %v78
    %v504 = vadd.s32 %v496, %v79
    %vm505 = vcmp.lt.s32.totalorder %v497, 64
    %vm506 = vcmp.lt.s32.totalorder %v498, 64
    %vm507 = vcmp.lt.s32.totalorder %v499, 64
    %vm508 = vcmp.lt.s32.totalorder %v500, 64
    %vm509 = vcmp.lt.s32.totalorder %v501, 64
    %vm510 = vcmp.lt.s32.totalorder %v502, 64
    %vm511 = vcmp.lt.s32.totalorder %v503, 64
    %vm512 = vcmp.lt.s32.totalorder %v504, 64
    %v513 = vsel %vm505, 1, 0
    %v514 = vsel %vm506, 1, 0
    %v515 = vsel %vm507, 1, 0
    %v516 = vsel %vm508, 1, 0
    %v517 = vsel %vm509, 1, 0
    %v518 = vsel %vm510, 1, 0
    %v519 = vsel %vm511, 1, 0
    %v520 = vsel %vm512, 1, 0
    %vm521 = vcmp.eq.s32.totalorder %v513, 1
    %vm522 = vcmp.eq.s32.totalorder %v514, 1
    %vm523 = vcmp.eq.s32.totalorder %v515, 1
    %vm524 = vcmp.eq.s32.totalorder %v516, 1
    %vm525 = vcmp.eq.s32.totalorder %v517, 1
    %vm526 = vcmp.eq.s32.totalorder %v518, 1
    %vm527 = vcmp.eq.s32.totalorder %v519, 1
    %vm528 = vcmp.eq.s32.totalorder %v520, 1
    %v529 = vsel %vm521, %v488, 0.0
    %v530 = vsel %vm522, %v489, 0.0
    %v531 = vsel %vm523, %v490, 0.0
    %v532 = vsel %vm524, %v491, 0.0
    %v533 = vsel %vm525, %v492, 0.0
    %v534 = vsel %vm526, %v493, 0.0
    %v535 = vsel %vm527, %v494, 0.0
    %v536 = vsel %vm528, %v495, 0.0
    %v537 = vld [vmem:[#allocation2] sm:$0xff]
    %v538 = vadd.f32 %v529, %v530
    %v539 = vadd.f32 %v538, %v531
    %v540 = vadd.f32 %v539, %v532
    %v541 = vadd.f32 %v540, %v533
    %v542 = vadd.f32 %v541, %v534
    %v543 = vadd.f32 %v542, %v535
    %v544 = vadd.f32 %v543, %v536
    %v545 = vadd.f32 %v537, %v544
    %546 = vst [vmem:[#allocation2] sm:$0xff] %v545
    // Predicated region
    $region22: #{tpu_custom_call.1} parent=1 // pred_check
      %p547 = pneg %p64
    $region23: #{tpu_custom_call.1} parent=1 // pred_check_branch
      %549 = sbr.rel (%p547) target = $region25
    $region24: #{tpu_custom_call.1} parent=1 // pred_region
      %v550 = vld [vmem:[#allocation2] sm:$0xff]
      %551 = vadd.xlane.f32.xlu0 %v550
      %v552 = vpop.xlane.xlu0 %551
      %v553 = vrot.slane %v552, 4
      %v554 = vadd.f32 %v552, %v553
      %v555 = vrot.slane %v554, 2
      %v556 = vadd.f32 %v554, %v555
      %v557 = vrot.slane %v556, 1
      %v558 = vadd.f32 %v556, %v557
      %s559 = vtos %v558
      %v560 = vstv %s559
      %v561 = vmul.f32 %v560, 0.00012207031
      %vm562 = vcmask 0
      %563 = vst.msk [vmem:[#allocation8] sm:$0x1] %vm562, %v561
    $region25: #{tpu_custom_call.1} parent=1 // pred_fallthru
      _
    // Predicated region
    $region26: #{tpu_custom_call.1} parent=1 // pred_check
      _
    $region27: #{tpu_custom_call.1} parent=1 // pred_check_branch
      %565 = sbr.rel (0) target = $region29
    $region28: #{tpu_custom_call.1} parent=1 // pred_region
      %567 = vsyncadd [#allocation5], 0
      %s569 = sshll.u32 [#allocation8], 4
      %s570 = int_to_ptr.vmem [resolvable:$true] %s569
      %s571 = sshll.u32 %s2, 4
      %s572 = int_to_ptr.hbm [resolvable:$true] %s571
      %574 = dma.vmem_to_hbm [thread:$0]  %s570, 16, %s572, [#allocation5]
    $region29: #{tpu_custom_call.1} parent=1 // pred_fallthru
      _
    // Predicated region
    $region30: #{tpu_custom_call.1} parent=1 // pred_check
      _
    $region31: #{tpu_custom_call.1} parent=1 // pred_check_branch
      %576 = sbr.rel (0) target = $region33
    $region32: #{tpu_custom_call.1} parent=1 // pred_region
      %578 = dma.done [#allocation5], 16
    $region33: #{tpu_custom_call.1} parent=1 // pred_fallthru
      _
    %579 = vsyncpa [#allocation4], 1
    %580 = vsyncpa [#allocation7], 1
    %581 = vsyncpa [#allocation5], 1

</llo_original>
